<compile_context>
chip_gen: v7x
topology: tpu7x:2x2x1
jax: 0.10.0
libtpu: 0.0.40
codegen_flags: <defaults>
</compile_context>

<pallas_src>
import functools

import jax
import jax.numpy as jnp
from jax.experimental import pallas as pl
from jax.experimental.pallas import tpu as pltpu


def _temporal_attn_kernel(x_lanes_ref, x_rows_ref, w2big_ref, w1t_t_ref,
                          blin_t_ref, abd_ref, bias_t_ref, tileb_ref,
                          mask_ref, o_ref, *, alpha):
    # x_lanes_ref: (Bt, K*F)      lane-dense view of the input window
    # x_rows_ref:  (Bt*K, F)      row view of the same input
    # w2big_ref:   (K*F, K*E)     block-diagonal W2^T (acts on x_j)
    # w1t_t_ref:   (F, K*E)       W1^T lane-tiled K times (acts on x_i)
    # blin_t_ref:  (1, K*E)       b_lin lane-tiled K times
    # abd_ref:     (K*E, K)       block-diagonal attention vector a
    # bias_t_ref:  (Bt*K, K)      additive attention bias, tiled over batch
    # tileb_ref:   (K, Bt*K)      0/1 lane-tiling matrix for the attn weights
    # mask_ref:    (Bt*K, Bt*K)   block-diagonal 0/1 batch mask
    # o_ref:       (Bt, K, F)     output block
    bt, k, f = o_ref.shape
    e = abd_ref.shape[0] // k
    n = bt * k
    ke = k * e

    x_lanes = x_lanes_ref[...].astype(jnp.float32)        # (Bt, K*F)
    x_rows = x_rows_ref[...].astype(jnp.float32)          # (Bt*K, F)

    # q_rows[b, j*E+c] = (W2 x_j)[c] : one MXU matmul straight off the
    # lane-dense input against the block-diagonal W2^T weight.
    q_rows = jnp.dot(x_lanes, w2big_ref[...],
                     preferred_element_type=jnp.float32)  # (Bt, K*E)
    # Broadcast over i; only a leading-dim merge (layout preserving).
    q_b = jnp.broadcast_to(q_rows[:, None, :], (bt, k, ke)).reshape(n, ke)

    # p_t[b*K+i, j*E+c] = (W1 x_i + b_lin)[c] : W1^T / b_lin pre-tiled along
    # lanes in the wrapper, so p lands lane-dense with no in-kernel tiling.
    p_t = jnp.dot(x_rows, w1t_t_ref[...],
                  preferred_element_type=jnp.float32) + blin_t_ref[...]

    # z lane-dense (Bt*K, K*E): LeakyReLU on fully dense vregs.
    z = p_t + q_b
    z = jnp.where(z >= 0, z, alpha * z)

    # e[b*K+i, j] = z . a via the block-structured 'a' -> j ends up in lanes,
    # which is exactly the softmax axis.
    e_att = jnp.dot(z, abd_ref[...],
                    preferred_element_type=jnp.float32)   # (Bt*K, K)
    e_att = e_att + bias_t_ref[...]

    # Row softmax over j; normalization folded after attn @ x.
    e_att = e_att - jnp.max(e_att, axis=-1, keepdims=True)
    w = jnp.exp(e_att)                                    # unnormalized attn
    l = jnp.sum(w, axis=-1, keepdims=True)                # (Bt*K, 1)
    inv_l = pl.reciprocal(l, approx=True)                 # EUP slot
    inv_l = inv_l * (2.0 - l * inv_l)                     # one NR step -> f32-exact
    # TODO(synk): training-mode dropout on the attention weights omitted (eval mode).

    # attn @ x as ONE flattened matmul: lane-tile w with a 0/1 matmul, mask to
    # block-diagonal, then (Bt*K, Bt*K) @ (Bt*K, F).  No per-batch MXU drains.
    w_full = jnp.dot(w, tileb_ref[...],
                     preferred_element_type=jnp.float32)  # (Bt*K, Bt*K)
    w_full = w_full * mask_ref[...]
    h = jnp.dot(w_full, x_rows,
                preferred_element_type=jnp.float32)       # (Bt*K, F)
    h = jax.nn.sigmoid(h * inv_l)

    o_ref[...] = h.reshape(bt, k, f).astype(o_ref.dtype)


def _step_vmem_bytes(bt, K, F, E):
    """Rough per-grid-step VMEM footprint (f32 words * 4)."""
    n = bt * K
    words = (
        2 * (bt * K * F) * 2                      # x (two views), double-buffered
        + (bt * K * F) * 2                        # output block, double-buffered
        + (K * F * K * E + F * K * E + K * E + K * E * K
           + n * K + K * n + n * n) * 2           # parameter operands
        + 3 * n * K * E                           # q_b, p_t, z
        + 3 * n * K                               # e / w / softmax temps
        + 2 * n * n                               # lane-tiled + masked attn matrix
        + 2 * n * F)                              # h temporaries
    return 4 * words


def _pick_batch_block(B, K, F, E, *, vmem_budget_bytes=16 * 1024 * 1024):
    """Default: one grid step (Bt = B).

    Grid iterations are a serial loop on a single TensorCore (v5e/v6e), so a
    split only pays when a full-batch block would blow the VMEM budget, or on
    v7x megacore when the per-core share is still large (B >= 64)."""
    def legal(d):
        if B % d != 0:
            return False
        if d == B:
            return True
        # Sub-batch blocks must respect the (8, 128) tiling of every BlockSpec.
        return d % 8 == 0 and (K * F) % 128 == 0

    cands = [d for d in range(1, B + 1) if legal(d)]
    fitting = [d for d in cands if _step_vmem_bytes(d, K, F, E) <= vmem_budget_bytes]
    if not fitting:
        return min(cands)
    if B >= 64:
        multi = [d for d in fitting if B // d >= 2]
        if multi:
            return max(multi)
    return max(fitting)


def temporal_attention_forward(x, w_lin, b_lin, a, bias, *, alpha,
                               batch_block=None):
    """x: (B, K, F);  w_lin: (E, 2F);  b_lin: (E,);  a: (E, 1);  bias: (K, K)."""
    B, K, F = x.shape
    E = w_lin.shape[0]
    out_dtype = x.dtype
    f32 = jnp.float32

    Bt = batch_block if batch_block is not None else _pick_batch_block(B, K, F, E)
    assert B % Bt == 0, "batch block must divide the batch size"
    n = Bt * K

    # Block-structured parameter operands (built once in the wrapper; these are
    # parameter-only transforms, free relative to the kernel).
    w1t = w_lin[:, :F].T.astype(f32)                       # (F, E) acts on x_i
    w2t = w_lin[:, F:].T.astype(f32)                       # (F, E) acts on x_j
    eye_k = jnp.eye(K, dtype=f32)
    w2big = jnp.kron(eye_k, w2t)                           # (K*F, K*E) block-diag W2^T
    w1t_t = jnp.kron(jnp.ones((1, K), f32), w1t)           # (F, K*E)  lane-tiled W1^T
    blin_t = jnp.tile(b_lin.reshape(1, E).astype(f32), (1, K))   # (1, K*E)
    abd = jnp.kron(eye_k, a.reshape(E, 1).astype(f32))     # (K*E, K)  block-diag a
    bias_t = jnp.tile(bias.astype(f32), (Bt, 1))           # (Bt*K, K)
    tileb = jnp.kron(jnp.ones((1, Bt), f32), eye_k)        # (K, Bt*K) lane tiling
    mask = jnp.kron(jnp.eye(Bt, dtype=f32), jnp.ones((K, K), f32))  # (Bt*K, Bt*K)

    # Two free HBM views of x: lane-dense (B, K*F) and row-major (B*K, F).
    x_lanes = x.reshape(B, K * F)
    x_rows = x.reshape(B * K, F)

    flops = (B // Bt) * (2 * Bt * (K * F) * (K * E)        # q_rows matmul
                         + 2 * n * F * (K * E)             # p_t matmul
                         + 2 * n * (K * E) * K             # e matmul
                         + 2 * n * K * n                   # w lane-tiling matmul
                         + 2 * n * n * F                   # attn @ x
                         + 4 * n * K * E)                  # z add + LeakyReLU
    transcendentals = B * (K * K + K * F + K)              # exp, sigmoid, recip
    bytes_accessed = 4 * (3 * B * K * F
                          + K * F * K * E + F * K * E + K * E + K * E * K
                          + (B // Bt) * (n * K + K * n + n * n))

    kernel = functools.partial(_temporal_attn_kernel, alpha=alpha)
    return pl.pallas_call(
        kernel,
        out_shape=jax.ShapeDtypeStruct((B, K, F), out_dtype),
        grid=(B // Bt,),
        in_specs=[
            pl.BlockSpec((Bt, K * F), lambda b: (b, 0)),        # x, lane-dense
            pl.BlockSpec((Bt * K, F), lambda b: (b, 0)),        # x, row view
            pl.BlockSpec((K * F, K * E), lambda b: (0, 0)),     # block-diag W2^T
            pl.BlockSpec((F, K * E), lambda b: (0, 0)),         # lane-tiled W1^T
            pl.BlockSpec((1, K * E), lambda b: (0, 0)),         # lane-tiled b_lin
            pl.BlockSpec((K * E, K), lambda b: (0, 0)),         # block-diag a
            pl.BlockSpec((Bt * K, K), lambda b: (0, 0)),        # tiled additive bias
            pl.BlockSpec((K, Bt * K), lambda b: (0, 0)),        # lane-tiling matrix
            pl.BlockSpec((Bt * K, Bt * K), lambda b: (0, 0)),   # block-diag mask
        ],
        out_specs=pl.BlockSpec((Bt, K, F), lambda b: (b, 0, 0)),
        compiler_params=pltpu.CompilerParams(
            dimension_semantics=("parallel",),
            vmem_limit_bytes=32 * 1024 * 1024),
        cost_estimate=pl.CostEstimate(
            flops=flops, transcendentals=transcendentals,
            bytes_accessed=bytes_accessed),
    )(x_lanes, x_rows, w2big, w1t_t, blin_t, abd, bias_t, tileb, mask)


def reference_forward(x, w_lin, b_lin, a, bias, alpha):
    """Plain-JAX transcription of the PyTorch forward (GATv2 path, eval mode)."""
    B, K, F = x.shape
    rep = jnp.repeat(x, K, axis=1)                # repeat_interleave(K, dim=1)
    alt = jnp.tile(x, (1, K, 1))                  # repeat(1, K, 1)
    combined = jnp.concatenate([rep, alt], axis=2).reshape(B, K, K, 2 * F)
    z = combined @ w_lin.T + b_lin
    z = jnp.where(z >= 0, z, alpha * z)
    e = (z @ a)[..., 0] + bias
    attn = jax.nn.softmax(e, axis=2)
    return jax.nn.sigmoid(attn @ x)


if __name__ == "__main__":
    # Module hyper-params: n_features=16, window_size=8, dropout=0.0, alpha=0.2,
    # embed_dim=None -> embed_dim = n_features, use_gatv2=True -> E = 2*16 = 32.
    B, K, F = 8, 8, 16
    E = 2 * F
    alpha = 0.2

    key = jax.random.PRNGKey(0)
    kx, kw, kb, ka, kbias = jax.random.split(key, 5)

    x = jax.random.normal(kx, (B, K, F), dtype=jnp.float32)

    # nn.Linear(2F, E): uniform(-1/sqrt(2F), 1/sqrt(2F)) for weight & bias.
    lin_bound = 1.0 / (2 * F) ** 0.5
    w_lin = jax.random.uniform(kw, (E, 2 * F), minval=-lin_bound, maxval=lin_bound,
                               dtype=jnp.float32)
    b_lin = jax.random.uniform(kb, (E,), minval=-lin_bound, maxval=lin_bound,
                               dtype=jnp.float32)

    # a: xavier_uniform_ with gain=1.414 on shape (E, 1).
    a_bound = 1.414 * (6.0 / (E + 1)) ** 0.5
    a = jax.random.uniform(ka, (E, 1), minval=-a_bound, maxval=a_bound,
                           dtype=jnp.float32)

    # bias parameter (window_size, window_size).
    bias = 0.1 * jax.random.normal(kbias, (K, K), dtype=jnp.float32)

    out = temporal_attention_forward(x, w_lin, b_lin, a, bias, alpha=alpha)
    out = jax.block_until_ready(out)

    ref = reference_forward(x, w_lin, b_lin, a, bias, alpha)
    assert out.shape == (B, K, F)
    assert jnp.allclose(out, ref, atol=1e-4, rtol=1e-4), "kernel mismatch vs reference"

    print("KERNEL_OK")
</pallas_src>

<mosaic_0001>
module attributes {stable_mosaic.version = 11 : i64} {
  func.func @_temporal_attn_kernel(%arg0: i32, %arg1: memref<8x128xf32, #tpu.memory_space<vmem>>, %arg2: memref<64x16xf32, #tpu.memory_space<vmem>>, %arg3: memref<128x256xf32, #tpu.memory_space<vmem>>, %arg4: memref<16x256xf32, #tpu.memory_space<vmem>>, %arg5: memref<1x256xf32, #tpu.memory_space<vmem>>, %arg6: memref<256x8xf32, #tpu.memory_space<vmem>>, %arg7: memref<64x8xf32, #tpu.memory_space<vmem>>, %arg8: memref<8x64xf32, #tpu.memory_space<vmem>>, %arg9: memref<64x64xf32, #tpu.memory_space<vmem>>, %arg10: memref<8x8x16xf32, #tpu.memory_space<vmem>>) attributes {dimension_semantics = [#tpu.dimension_semantics<parallel>], iteration_bounds = array<i64: 1>, scalar_prefetch = 0 : i64, scratch_operands = 0 : i64, tpu.core_type = #tpu.core_type<tc>, window_params = [{transform_indices = @transform_0, window_bounds = array<i64: 8, 128>}, {transform_indices = @transform_1, window_bounds = array<i64: 64, 16>}, {pipeline_mode = #tpu.pipeline_mode<synchronous>, transform_indices = @transform_2, window_bounds = array<i64: 128, 256>}, {pipeline_mode = #tpu.pipeline_mode<synchronous>, transform_indices = @transform_3, window_bounds = array<i64: 16, 256>}, {pipeline_mode = #tpu.pipeline_mode<synchronous>, transform_indices = @transform_4, window_bounds = array<i64: 1, 256>}, {pipeline_mode = #tpu.pipeline_mode<synchronous>, transform_indices = @transform_5, window_bounds = array<i64: 256, 8>}, {pipeline_mode = #tpu.pipeline_mode<synchronous>, transform_indices = @transform_6, window_bounds = array<i64: 64, 8>}, {pipeline_mode = #tpu.pipeline_mode<synchronous>, transform_indices = @transform_7, window_bounds = array<i64: 8, 64>}, {pipeline_mode = #tpu.pipeline_mode<synchronous>, transform_indices = @transform_8, window_bounds = array<i64: 64, 64>}, {transform_indices = @transform_9, window_bounds = array<i64: 8, 8, 16>}]} {
    %c0 = arith.constant 0 : index
    %c0_0 = arith.constant 0 : index
    %0 = vector.load %arg1[%c0, %c0_0] : memref<8x128xf32, #tpu.memory_space<vmem>>, vector<8x128xf32>
    %c0_1 = arith.constant 0 : index
    %c0_2 = arith.constant 0 : index
    %1 = vector.load %arg2[%c0_1, %c0_2] : memref<64x16xf32, #tpu.memory_space<vmem>>, vector<64x16xf32>
    %c0_3 = arith.constant 0 : index
    %c0_4 = arith.constant 0 : index
    %2 = vector.load %arg3[%c0_3, %c0_4] : memref<128x256xf32, #tpu.memory_space<vmem>>, vector<128x256xf32>
    %cst = arith.constant dense<0.000000e+00> : vector<8x256xf32>
    %3 = tpu.matmul %0, %2, %cst {dimension_numbers = #tpu.dot_dimension_numbers<[1], [0], [0], [1], [0, 0, 1, 1], [], []>} : vector<8x128xf32>, vector<128x256xf32>, vector<8x256xf32> -> vector<8x256xf32>
    %4 = vector.shape_cast %3 : vector<8x256xf32> to vector<8x1x256xf32>
    %5 = vector.shape_cast %4 : vector<8x1x256xf32> to vector<8x1x256xf32>
    %6 = vector.broadcast %5 : vector<8x1x256xf32> to vector<8x8x256xf32>
    %7 = vector.shape_cast %6 : vector<8x8x256xf32> to vector<64x256xf32>
    %c0_5 = arith.constant 0 : index
    %c0_6 = arith.constant 0 : index
    %8 = vector.load %arg4[%c0_5, %c0_6] : memref<16x256xf32, #tpu.memory_space<vmem>>, vector<16x256xf32>
    %cst_7 = arith.constant dense<0.000000e+00> : vector<64x256xf32>
    %9 = tpu.matmul %1, %8, %cst_7 {dimension_numbers = #tpu.dot_dimension_numbers<[1], [0], [0], [1], [0, 0, 1, 1], [], []>} : vector<64x16xf32>, vector<16x256xf32>, vector<64x256xf32> -> vector<64x256xf32>
    %c0_8 = arith.constant 0 : index
    %c0_9 = arith.constant 0 : index
    %10 = vector.load %arg5[%c0_8, %c0_9] : memref<1x256xf32, #tpu.memory_space<vmem>>, vector<1x256xf32>
    %11 = vector.broadcast %10 : vector<1x256xf32> to vector<64x256xf32>
    %12 = arith.addf %9, %11 : vector<64x256xf32>
    %13 = arith.addf %12, %7 : vector<64x256xf32>
    %cst_10 = arith.constant 0.000000e+00 : f32
    %14 = vector.broadcast %cst_10 : f32 to vector<64x256xf32>
    %15 = arith.cmpf oge, %13, %14 : vector<64x256xf32>
    %cst_11 = arith.constant 2.000000e-01 : f32
    %16 = vector.broadcast %cst_11 : f32 to vector<64x256xf32>
    %17 = arith.mulf %16, %13 : vector<64x256xf32>
    %18 = arith.select %15, %13, %17 : vector<64x256xi1>, vector<64x256xf32>
    %c0_12 = arith.constant 0 : index
    %c0_13 = arith.constant 0 : index
    %19 = vector.load %arg6[%c0_12, %c0_13] : memref<256x8xf32, #tpu.memory_space<vmem>>, vector<256x8xf32>
    %cst_14 = arith.constant dense<0.000000e+00> : vector<64x8xf32>
    %20 = tpu.matmul %18, %19, %cst_14 {dimension_numbers = #tpu.dot_dimension_numbers<[1], [0], [0], [1], [0, 0, 1, 1], [], []>} : vector<64x256xf32>, vector<256x8xf32>, vector<64x8xf32> -> vector<64x8xf32>
    %c0_15 = arith.constant 0 : index
    %c0_16 = arith.constant 0 : index
    %21 = vector.load %arg7[%c0_15, %c0_16] : memref<64x8xf32, #tpu.memory_space<vmem>>, vector<64x8xf32>
    %22 = arith.addf %20, %21 : vector<64x8xf32>
    %cst_17 = arith.constant dense<0xFF800000> : vector<64xf32>
    %23 = vector.multi_reduction <maximumf>, %22, %cst_17 [1] : vector<64x8xf32> to vector<64xf32>
    %24 = vector.shape_cast %23 : vector<64xf32> to vector<64x1xf32>
    %25 = vector.broadcast %24 : vector<64x1xf32> to vector<64x8xf32>
    %26 = arith.subf %22, %25 : vector<64x8xf32>
    %27 = math.exp %26 : vector<64x8xf32>
    %cst_18 = arith.constant dense<0.000000e+00> : vector<64xf32>
    %28 = vector.multi_reduction <add>, %27, %cst_18 [1] : vector<64x8xf32> to vector<64xf32>
    %29 = vector.shape_cast %28 : vector<64xf32> to vector<64x1xf32>
    %30 = tpu.reciprocal %29 {approx = true} : vector<64x1xf32> -> vector<64x1xf32>
    %31 = arith.mulf %29, %30 : vector<64x1xf32>
    %cst_19 = arith.constant 2.000000e+00 : f32
    %32 = vector.broadcast %cst_19 : f32 to vector<64x1xf32>
    %33 = arith.subf %32, %31 : vector<64x1xf32>
    %34 = arith.mulf %30, %33 : vector<64x1xf32>
    %c0_20 = arith.constant 0 : index
    %c0_21 = arith.constant 0 : index
    %35 = vector.load %arg8[%c0_20, %c0_21] : memref<8x64xf32, #tpu.memory_space<vmem>>, vector<8x64xf32>
    %cst_22 = arith.constant dense<0.000000e+00> : vector<64x64xf32>
    %36 = tpu.matmul %27, %35, %cst_22 {dimension_numbers = #tpu.dot_dimension_numbers<[1], [0], [0], [1], [0, 0, 1, 1], [], []>} : vector<64x8xf32>, vector<8x64xf32>, vector<64x64xf32> -> vector<64x64xf32>
    %c0_23 = arith.constant 0 : index
    %c0_24 = arith.constant 0 : index
    %37 = vector.load %arg9[%c0_23, %c0_24] : memref<64x64xf32, #tpu.memory_space<vmem>>, vector<64x64xf32>
    %38 = arith.mulf %36, %37 : vector<64x64xf32>
    %cst_25 = arith.constant dense<0.000000e+00> : vector<64x16xf32>
    %39 = tpu.matmul %38, %1, %cst_25 {dimension_numbers = #tpu.dot_dimension_numbers<[1], [0], [0], [1], [0, 0, 1, 1], [], []>} : vector<64x64xf32>, vector<64x16xf32>, vector<64x16xf32> -> vector<64x16xf32>
    %40 = vector.broadcast %34 : vector<64x1xf32> to vector<64x16xf32>
    %41 = arith.mulf %39, %40 : vector<64x16xf32>
    %42 = arith.negf %41 : vector<64x16xf32>
    %43 = math.exp %42 : vector<64x16xf32>
    %cst_26 = arith.constant 1.000000e+00 : f32
    %44 = vector.broadcast %cst_26 : f32 to vector<64x16xf32>
    %45 = arith.addf %44, %43 : vector<64x16xf32>
    %46 = arith.divf %44, %45 : vector<64x16xf32>
    %47 = vector.shape_cast %46 : vector<64x16xf32> to vector<8x8x16xf32>
    %c0_27 = arith.constant 0 : index
    %c0_28 = arith.constant 0 : index
    %c0_29 = arith.constant 0 : index
    %48 = vector.load %arg10[%c0_27, %c0_28, %c0_29] : memref<8x8x16xf32, #tpu.memory_space<vmem>>, vector<8x8x16xf32>
    tpu.vector_store %arg10[%c0_27, %c0_28, %c0_29], %47 {strides = array<i32>} : memref<8x8x16xf32, #tpu.memory_space<vmem>>, vector<8x8x16xf32>,
    return
  }
  func.func @transform_0(%arg0: i32) -> (i32, i32) {
    %c0_i32 = arith.constant 0 : i32
    %c0_i32_0 = arith.constant 0 : i32
    return %arg0, %c0_i32 : i32, i32
  }
  func.func @transform_1(%arg0: i32) -> (i32, i32) {
    %c0_i32 = arith.constant 0 : i32
    %c0_i32_0 = arith.constant 0 : i32
    return %arg0, %c0_i32 : i32, i32
  }
  func.func @transform_2(%arg0: i32) -> (i32, i32) {
    %c0_i32 = arith.constant 0 : i32
    %c0_i32_0 = arith.constant 0 : i32
    %c0_i32_1 = arith.constant 0 : i32
    return %c0_i32, %c0_i32_0 : i32, i32
  }
  func.func @transform_3(%arg0: i32) -> (i32, i32) {
    %c0_i32 = arith.constant 0 : i32
    %c0_i32_0 = arith.constant 0 : i32
    %c0_i32_1 = arith.constant 0 : i32
    return %c0_i32, %c0_i32_0 : i32, i32
  }
  func.func @transform_4(%arg0: i32) -> (i32, i32) {
    %c0_i32 = arith.constant 0 : i32
    %c0_i32_0 = arith.constant 0 : i32
    %c0_i32_1 = arith.constant 0 : i32
    return %c0_i32, %c0_i32_0 : i32, i32
  }
  func.func @transform_5(%arg0: i32) -> (i32, i32) {
    %c0_i32 = arith.constant 0 : i32
    %c0_i32_0 = arith.constant 0 : i32
    %c0_i32_1 = arith.constant 0 : i32
    return %c0_i32, %c0_i32_0 : i32, i32
  }
  func.func @transform_6(%arg0: i32) -> (i32, i32) {
    %c0_i32 = arith.constant 0 : i32
    %c0_i32_0 = arith.constant 0 : i32
    %c0_i32_1 = arith.constant 0 : i32
    return %c0_i32, %c0_i32_0 : i32, i32
  }
  func.func @transform_7(%arg0: i32) -> (i32, i32) {
    %c0_i32 = arith.constant 0 : i32
    %c0_i32_0 = arith.constant 0 : i32
    %c0_i32_1 = arith.constant 0 : i32
    return %c0_i32, %c0_i32_0 : i32, i32
  }
  func.func @transform_8(%arg0: i32) -> (i32, i32) {
    %c0_i32 = arith.constant 0 : i32
    %c0_i32_0 = arith.constant 0 : i32
    %c0_i32_1 = arith.constant 0 : i32
    return %c0_i32, %c0_i32_0 : i32, i32
  }
  func.func @transform_9(%arg0: i32) -> (i32, i32, i32) {
    %c0_i32 = arith.constant 0 : i32
    %c0_i32_0 = arith.constant 0 : i32
    %c0_i32_1 = arith.constant 0 : i32
    return %arg0, %c0_i32, %c0_i32_0 : i32, i32, i32
  }
}

</mosaic_0001>

<llo_original>
// kernel: tpu_custom_call.1
$region0: #{tpu_custom_call.1}
  #allocation0 [shape = 'u32[]', space=smem, size = 0x4, offset = 0x4, fixed_abs, tag = 'smem constant byte address 0x4 - core index']
  #allocation1 [shape = 'u32[144,128]{1,0:T(1,128)}', space=vmem, size = 0x12000, scoped, tag = 'internal scratch']
  %s0 = inlined_call_operand.vmem [shape: f32[8,128], index: 0, kind: input, shape index: {}]
  %s1 = inlined_call_operand.vmem [shape: f32[64,16], index: 1, kind: input, shape index: {}]
  %s2 = inlined_call_operand.vmem [shape: f32[128,256], index: 2, kind: input, shape index: {}]
  %s3 = inlined_call_operand.vmem [shape: f32[16,256], index: 3, kind: input, shape index: {}]
  %s4 = inlined_call_operand.vmem [shape: f32[1,256], index: 4, kind: input, shape index: {}]
  %s5 = inlined_call_operand.vmem [shape: f32[256,8], index: 5, kind: input, shape index: {}]
  %s6 = inlined_call_operand.vmem [shape: f32[64,8], index: 6, kind: input, shape index: {}]
  %s7 = inlined_call_operand.vmem [shape: f32[8,64], index: 7, kind: input, shape index: {}]
  %s8 = inlined_call_operand.vmem [shape: f32[64,64], index: 8, kind: input, shape index: {}]
  %s9 = inlined_call_operand.hbm [shape: f32[8,8,16], index: 9, kind: output, shape index: {}]
  %s10 = sld [smem:[#allocation0]]
  $region46: #{tpu_custom_call.1} parent=0
    _
  %s12 = ssub.s32 1, %s10
  %s13 = scalar_select 0, %s12, %s10
  $region1: #{tpu_custom_call.1} parent=0
    #allocation2 [shape = 'u8[32768]{0}', space=vmem, size = 0x8000, scoped, tag = 'output window, operand 0, single buffered']
    #allocation3 [shape = 's32[1]{0}', space=sflag, size = 0x4, scoped, tag = 'scoped memory for tpu_custom_call.1']
    %14 = vsyncpa [#allocation3], 0
    // Predicated region
    $region2: #{tpu_custom_call.1} parent=1 // pred_check
      _
    $region3: #{tpu_custom_call.1} parent=1 // pred_check_branch
      %16 = sbr.rel (0) target = $region5
    $region4: #{tpu_custom_call.1} parent=1 // pred_region
      _
    $region5: #{tpu_custom_call.1} parent=1 // pred_fallthru
      _
    // Predicated region
    $region6: #{tpu_custom_call.1} parent=1 // pred_check
      _
    $region7: #{tpu_custom_call.1} parent=1 // pred_check_branch
      %18 = sbr.rel (0) target = $region9
    $region8: #{tpu_custom_call.1} parent=1 // pred_region
      _
    $region9: #{tpu_custom_call.1} parent=1 // pred_fallthru
      _
    // Predicated region
    $region10: #{tpu_custom_call.1} parent=1 // pred_check
      _
    $region11: #{tpu_custom_call.1} parent=1 // pred_check_branch
      %20 = sbr.rel (0) target = $region13
    $region12: #{tpu_custom_call.1} parent=1 // pred_region
      _
    $region13: #{tpu_custom_call.1} parent=1 // pred_fallthru
      _
    // Predicated region
    $region14: #{tpu_custom_call.1} parent=1 // pred_check
      _
    $region15: #{tpu_custom_call.1} parent=1 // pred_check_branch
      %22 = sbr.rel (0) target = $region17
    $region16: #{tpu_custom_call.1} parent=1 // pred_region
      _
    $region17: #{tpu_custom_call.1} parent=1 // pred_fallthru
      _
    // Predicated region
    $region18: #{tpu_custom_call.1} parent=1 // pred_check
      _
    $region19: #{tpu_custom_call.1} parent=1 // pred_check_branch
      %24 = sbr.rel (0) target = $region21
    $region20: #{tpu_custom_call.1} parent=1 // pred_region
      _
    $region21: #{tpu_custom_call.1} parent=1 // pred_fallthru
      _
    // Predicated region
    $region22: #{tpu_custom_call.1} parent=1 // pred_check
      _
    $region23: #{tpu_custom_call.1} parent=1 // pred_check_branch
      %26 = sbr.rel (0) target = $region25
    $region24: #{tpu_custom_call.1} parent=1 // pred_region
      _
    $region25: #{tpu_custom_call.1} parent=1 // pred_fallthru
      _
    // Predicated region
    $region26: #{tpu_custom_call.1} parent=1 // pred_check
      _
    $region27: #{tpu_custom_call.1} parent=1 // pred_check_branch
      %28 = sbr.rel (0) target = $region29
    $region28: #{tpu_custom_call.1} parent=1 // pred_region
      _
    $region29: #{tpu_custom_call.1} parent=1 // pred_fallthru
      _
    // Predicated region
    $region30: #{tpu_custom_call.1} parent=1 // pred_check
      _
    $region31: #{tpu_custom_call.1} parent=1 // pred_check_branch
      %30 = sbr.rel (0) target = $region33
    $region32: #{tpu_custom_call.1} parent=1 // pred_region
      _
    $region33: #{tpu_custom_call.1} parent=1 // pred_fallthru
      _
    // Predicated region
    $region34: #{tpu_custom_call.1} parent=1 // pred_check
      _
    $region35: #{tpu_custom_call.1} parent=1 // pred_check_branch
      %32 = sbr.rel (0) target = $region37
    $region36: #{tpu_custom_call.1} parent=1 // pred_region
      _
    $region37: #{tpu_custom_call.1} parent=1 // pred_fallthru
      _
    %v33 = vld [vmem:[%s0] sm:$0xff]
    %v34 = vld [vmem:[%s1] sm:$0xff]
    %v35 = vld [vmem:[%s1 + $0x8] sm:$0xff]
    %v36 = vld [vmem:[%s1 + $0x10] sm:$0xff]
    %v37 = vld [vmem:[%s1 + $0x18] sm:$0xff]
    %v38 = vld [vmem:[%s1 + $0x20] sm:$0xff]
    %v39 = vld [vmem:[%s1 + $0x28] sm:$0xff]
    %v40 = vld [vmem:[%s1 + $0x30] sm:$0xff]
    %v41 = vld [vmem:[%s1 + $0x38] sm:$0xff]
    %v42 = vld [vmem:[%s2] sm:$0xff]
    %v43 = vld [vmem:[%s2 + $0x8] sm:$0xff]
    %v44 = vld [vmem:[%s2 + $0x10] sm:$0xff]
    %v45 = vld [vmem:[%s2 + $0x18] sm:$0xff]
    %v46 = vld [vmem:[%s2 + $0x20] sm:$0xff]
    %v47 = vld [vmem:[%s2 + $0x28] sm:$0xff]
    %v48 = vld [vmem:[%s2 + $0x30] sm:$0xff]
    %v49 = vld [vmem:[%s2 + $0x38] sm:$0xff]
    %v50 = vld [vmem:[%s2 + $0x40] sm:$0xff]
    %v51 = vld [vmem:[%s2 + $0x48] sm:$0xff]
    %v52 = vld [vmem:[%s2 + $0x50] sm:$0xff]
    %v53 = vld [vmem:[%s2 + $0x58] sm:$0xff]
    %v54 = vld [vmem:[%s2 + $0x60] sm:$0xff]
    %v55 = vld [vmem:[%s2 + $0x68] sm:$0xff]
    %v56 = vld [vmem:[%s2 + $0x70] sm:$0xff]
    %v57 = vld [vmem:[%s2 + $0x78] sm:$0xff]
    %v58 = vld [vmem:[%s2 + $0x80] sm:$0xff]
    %v59 = vld [vmem:[%s2 + $0x88] sm:$0xff]
    %v60 = vld [vmem:[%s2 + $0x90] sm:$0xff]
    %v61 = vld [vmem:[%s2 + $0x98] sm:$0xff]
    %v62 = vld [vmem:[%s2 + $0xa0] sm:$0xff]
    %v63 = vld [vmem:[%s2 + $0xa8] sm:$0xff]
    %v64 = vld [vmem:[%s2 + $0xb0] sm:$0xff]
    %v65 = vld [vmem:[%s2 + $0xb8] sm:$0xff]
    %v66 = vld [vmem:[%s2 + $0xc0] sm:$0xff]
    %v67 = vld [vmem:[%s2 + $0xc8] sm:$0xff]
    %v68 = vld [vmem:[%s2 + $0xd0] sm:$0xff]
    %v69 = vld [vmem:[%s2 + $0xd8] sm:$0xff]
    %v70 = vld [vmem:[%s2 + $0xe0] sm:$0xff]
    %v71 = vld [vmem:[%s2 + $0xe8] sm:$0xff]
    %v72 = vld [vmem:[%s2 + $0xf0] sm:$0xff]
    %v73 = vld [vmem:[%s2 + $0xf8] sm:$0xff]
    %74 = vmatprep.subr.mxu0 %v43
    %75 = vmatpush1.msra.mxu0 %v42
    %76 = vmatprep.subr.mxu0 %v45
    %77 = vmatpush1.msra.mxu0 %v44
    %78 = vmatprep.subr.mxu0 %v47
    %79 = vmatpush1.msra.mxu0 %v46
    %80 = vmatprep.subr.mxu0 %v49
    %81 = vmatpush1.msra.mxu0 %v48
    %82 = vmatprep.subr.mxu0 %v51
    %83 = vmatpush1.msra.mxu0 %v50
    %84 = vmatprep.subr.mxu0 %v53
    %85 = vmatpush1.msra.mxu0 %v52
    %86 = vmatprep.subr.mxu0 %v55
    %87 = vmatpush1.msra.mxu0 %v54
    %88 = vmatprep.subr.mxu0 %v57
    %89 = vmatpush1.msra.mxu0 %v56
    %90 = vmatprep.subr.mxu0 %v59
    %91 = vmatpush1.msra.mxu0 %v58
    %92 = vmatprep.subr.mxu0 %v61
    %93 = vmatpush1.msra.mxu0 %v60
    %94 = vmatprep.subr.mxu0 %v63
    %95 = vmatpush1.msra.mxu0 %v62
    %96 = vmatprep.subr.mxu0 %v65
    %97 = vmatpush1.msra.mxu0 %v64
    %98 = vmatprep.subr.mxu0 %v67
    %99 = vmatpush1.msra.mxu0 %v66
    %100 = vmatprep.subr.mxu0 %v69
    %101 = vmatpush1.msra.mxu0 %v68
    %102 = vmatprep.subr.mxu0 %v71
    %103 = vmatpush1.msra.mxu0 %v70
    %104 = vmatprep.subr.mxu0 %v73
    %105 = vmatpush1.msra.mxu0 %v72
    %106 = vmatprep.subr.mxu0 0.0
    %107 = vmatpush1.msra.mxu0 0.0
    %108 = vmatprep.subr.mxu0 0.0
    %109 = vmatpush1.msra.mxu0 0.0
    %110 = vmatprep.subr.mxu0 0.0
    %111 = vmatpush1.msra.mxu0 0.0
    %112 = vmatprep.subr.mxu0 0.0
    %113 = vmatpush1.msra.mxu0 0.0
    %114 = vmatprep.subr.mxu0 0.0
    %115 = vmatpush1.msra.mxu0 0.0
    %116 = vmatprep.subr.mxu0 0.0
    %117 = vmatpush1.msra.mxu0 0.0
    %118 = vmatprep.subr.mxu0 0.0
    %119 = vmatpush1.msra.mxu0 0.0
    %120 = vmatprep.subr.mxu0 0.0
    %121 = vmatpush1.msra.mxu0 0.0
    %122 = vmatprep.subr.mxu0 0.0
    %123 = vmatpush1.msra.mxu0 0.0
    %124 = vmatprep.subr.mxu0 0.0
    %125 = vmatpush1.msra.mxu0 0.0
    %126 = vmatprep.subr.mxu0 0.0
    %127 = vmatpush1.msra.mxu0 0.0
    %128 = vmatprep.subr.mxu0 0.0
    %129 = vmatpush1.msra.mxu0 0.0
    %130 = vmatprep.subr.mxu0 0.0
    %131 = vmatpush1.msra.mxu0 0.0
    %132 = vmatprep.subr.mxu0 0.0
    %133 = vmatpush1.msra.mxu0 0.0
    %134 = vmatprep.subr.mxu0 0.0
    %135 = vmatpush1.msra.mxu0 0.0
    %136 = vmatprep.subr.mxu0 0.0
    %137 = vmatpush1.msra.mxu0 0.0
    %138 = vmatprep.mubr.f32.mxu0 0.0
    %139 = vmatmul.mubr.f32.gmra.mrb[0].mxu0 %v33
    %v140 = vpop.f32.mrb[0].mxu0
    %v141 = vadd.f32 0.0, %v140
    %v142 = vpop.f32.mrb[0].mxu0
    %v143 = vadd.f32 0.0, %v142
    %144 = vdwg.mxu0
    %v147 = vcombine.low %v141, %v143
    %v148 = vcombine.high %v141, %v143
    %v150 = vunpack.c.l.s4 1966171168
    %v151 = vunpack.c.0.s8 %v150
    %v152 = vlaneseq
    %v153 = vshrl.u32 %v152, 7
    %v154 = vsub.s32 %v151, %v153
    %v155 = vrot.slane %v147, %v154
    %v157 = vunpack.c.l.s4 1966171168
    %v158 = vunpack.c.0.s8 %v157
    %v159 = vlaneseq
    %v160 = vshrl.u32 %v159, 7
    %v161 = vsub.s32 %v158, %v160
    %v162 = vrot.slane %v148, %v161
    %v163 = vcombine.high %v155, %v155
    %v164 = vcombine.high %v162, %v162
    %v166 = vunpack.c.l.s4 1966171168
    %v167 = vunpack.c.0.s8 %v166
    %v168 = vlaneseq
    %v169 = vshrl.u32 %v168, 7
    %v170 = vsub.s32 %v167, %v169
    %v171 = vrot.slane %v155, %v170
    %v173 = vunpack.c.l.s4 1966171168
    %v174 = vunpack.c.0.s8 %v173
    %v175 = vlaneseq
    %v176 = vshrl.u32 %v175, 7
    %v177 = vsub.s32 %v174, %v176
    %v178 = vrot.slane %v162, %v177
    %v180 = vunpack.c.l.s4 1966171168
    %v181 = vunpack.c.0.s8 %v180
    %v182 = vlaneseq
    %v183 = vshrl.u32 %v182, 7
    %v184 = vsub.s32 %v181, %v183
    %v185 = vrot.slane %v163, %v184
    %v187 = vunpack.c.l.s4 1966171168
    %v188 = vunpack.c.0.s8 %v187
    %v189 = vlaneseq
    %v190 = vshrl.u32 %v189, 7
    %v191 = vsub.s32 %v188, %v190
    %v192 = vrot.slane %v164, %v191
    %v193 = vcombine.high %v171, %v171
    %v194 = vcombine.high %v178, %v178
    %v195 = vcombine.high %v185, %v185
    %v196 = vcombine.high %v192, %v192
    %v197 = vlaneseq
    %v198 = vshrl.u32 %v197, 7
    %v199 = vsub.s32 0, %v198
    %v200 = vrot.slane %v171, %v199
    %v201 = vlaneseq
    %v202 = vshrl.u32 %v201, 7
    %v203 = vsub.s32 1, %v202
    %v204 = vrot.slane %v171, %v203
    %v205 = vlaneseq
    %v206 = vshrl.u32 %v205, 7
    %v207 = vsub.s32 0, %v206
    %v208 = vrot.slane %v185, %v207
    %v209 = vlaneseq
    %v210 = vshrl.u32 %v209, 7
    %v211 = vsub.s32 1, %v210
    %v212 = vrot.slane %v185, %v211
    %v213 = vlaneseq
    %v214 = vshrl.u32 %v213, 7
    %v215 = vsub.s32 0, %v214
    %v216 = vrot.slane %v193, %v215
    %v217 = vlaneseq
    %v218 = vshrl.u32 %v217, 7
    %v219 = vsub.s32 1, %v218
    %v220 = vrot.slane %v193, %v219
    %v221 = vlaneseq
    %v222 = vshrl.u32 %v221, 7
    %v223 = vsub.s32 0, %v222
    %v224 = vrot.slane %v195, %v223
    %v225 = vlaneseq
    %v226 = vshrl.u32 %v225, 7
    %v227 = vsub.s32 1, %v226
    %v228 = vrot.slane %v195, %v227
    %v229 = vlaneseq
    %v230 = vshrl.u32 %v229, 7
    %v231 = vsub.s32 0, %v230
    %v232 = vrot.slane %v178, %v231
    %v233 = vlaneseq
    %v234 = vshrl.u32 %v233, 7
    %v235 = vsub.s32 1, %v234
    %v236 = vrot.slane %v178, %v235
    %v237 = vlaneseq
    %v238 = vshrl.u32 %v237, 7
    %v239 = vsub.s32 0, %v238
    %v240 = vrot.slane %v192, %v239
    %v241 = vlaneseq
    %v242 = vshrl.u32 %v241, 7
    %v243 = vsub.s32 1, %v242
    %v244 = vrot.slane %v192, %v243
    %v245 = vlaneseq
    %v246 = vshrl.u32 %v245, 7
    %v247 = vsub.s32 0, %v246
    %v248 = vrot.slane %v194, %v247
    %v249 = vlaneseq
    %v250 = vshrl.u32 %v249, 7
    %v251 = vsub.s32 1, %v250
    %v252 = vrot.slane %v194, %v251
    %v253 = vlaneseq
    %v254 = vshrl.u32 %v253, 7
    %v255 = vsub.s32 0, %v254
    %v256 = vrot.slane %v196, %v255
    %v257 = vlaneseq
    %v258 = vshrl.u32 %v257, 7
    %v259 = vsub.s32 1, %v258
    %v260 = vrot.slane %v196, %v259
    %v277 = vld [vmem:[%s3] sm:$0xff]
    %v278 = vld [vmem:[%s3 + $0x8] sm:$0xff]
    %v279 = vld [vmem:[%s3 + $0x10] sm:$0xff]
    %v280 = vld [vmem:[%s3 + $0x18] sm:$0xff]
    %v281 = vld [vmem:[%s4] sm:$0x3]
    %v283 = vlaneseq
    %v284 = vshrl.u32 %v283, 7
    %v285 = vsub.s32 0, %v284
    %v286 = vrot.slane %v281, %v285
    %v287 = vlaneseq
    %v288 = vshrl.u32 %v287, 7
    %v289 = vsub.s32 1, %v288
    %v290 = vrot.slane %v281, %v289
    %vm293 = vcmask 130048
    %v295 = vsel %vm293, %v34, 0
    %v298 = vsel %vm293, %v35, 0
    %v301 = vsel %vm293, %v36, 0
    %v304 = vsel %vm293, %v37, 0
    %v307 = vsel %vm293, %v38, 0
    %v310 = vsel %vm293, %v39, 0
    %v313 = vsel %vm293, %v40, 0
    %v316 = vsel %vm293, %v41, 0
    %318 = vmatprep.subr.mxu0 %v278
    %319 = vmatpush1.msra.mxu0 %v277
    %320 = vmatprep.subr.mxu0 %v280
    %321 = vmatpush1.msra.mxu0 %v279
    %322 = vmatprep.subr.mxu0 0.0
    %323 = vmatpush1.msra.mxu0 0.0
    %324 = vmatprep.subr.mxu0 0.0
    %325 = vmatpush1.msra.mxu0 0.0
    %326 = vmatprep.subr.mxu0 0.0
    %327 = vmatpush1.msra.mxu0 0.0
    %328 = vmatprep.subr.mxu0 0.0
    %329 = vmatpush1.msra.mxu0 0.0
    %330 = vmatprep.subr.mxu0 0.0
    %331 = vmatpush1.msra.mxu0 0.0
    %332 = vmatprep.subr.mxu0 0.0
    %333 = vmatpush1.msra.mxu0 0.0
    %334 = vmatprep.subr.mxu0 0.0
    %335 = vmatpush1.msra.mxu0 0.0
    %336 = vmatprep.subr.mxu0 0.0
    %337 = vmatpush1.msra.mxu0 0.0
    %338 = vmatprep.subr.mxu0 0.0
    %339 = vmatpush1.msra.mxu0 0.0
    %340 = vmatprep.subr.mxu0 0.0
    %341 = vmatpush1.msra.mxu0 0.0
    %342 = vmatprep.subr.mxu0 0.0
    %343 = vmatpush1.msra.mxu0 0.0
    %344 = vmatprep.subr.mxu0 0.0
    %345 = vmatpush1.msra.mxu0 0.0
    %346 = vmatprep.subr.mxu0 0.0
    %347 = vmatpush1.msra.mxu0 0.0
    %348 = vmatprep.subr.mxu0 0.0
    %349 = vmatpush1.msra.mxu0 0.0
    %350 = vmatprep.subr.mxu0 0.0
    %351 = vmatpush1.msra.mxu0 0.0
    %352 = vmatprep.subr.mxu0 0.0
    %353 = vmatpush1.msra.mxu0 0.0
    %354 = vmatprep.subr.mxu0 0.0
    %355 = vmatpush1.msra.mxu0 0.0
    %356 = vmatprep.subr.mxu0 0.0
    %357 = vmatpush1.msra.mxu0 0.0
    %358 = vmatprep.subr.mxu0 0.0
    %359 = vmatpush1.msra.mxu0 0.0
    %360 = vmatprep.subr.mxu0 0.0
    %361 = vmatpush1.msra.mxu0 0.0
    %362 = vmatprep.subr.mxu0 0.0
    %363 = vmatpush1.msra.mxu0 0.0
    %364 = vmatprep.subr.mxu0 0.0
    %365 = vmatpush1.msra.mxu0 0.0
    %366 = vmatprep.subr.mxu0 0.0
    %367 = vmatpush1.msra.mxu0 0.0
    %368 = vmatprep.subr.mxu0 0.0
    %369 = vmatpush1.msra.mxu0 0.0
    %370 = vmatprep.subr.mxu0 0.0
    %371 = vmatpush1.msra.mxu0 0.0
    %372 = vmatprep.subr.mxu0 0.0
    %373 = vmatpush1.msra.mxu0 0.0
    %374 = vmatprep.subr.mxu0 0.0
    %375 = vmatpush1.msra.mxu0 0.0
    %376 = vmatprep.subr.mxu0 0.0
    %377 = vmatpush1.msra.mxu0 0.0
    %378 = vmatprep.subr.mxu0 0.0
    %379 = vmatpush1.msra.mxu0 0.0
    %380 = vmatprep.subr.mxu0 0.0
    %381 = vmatpush1.msra.mxu0 0.0
    %382 = vmatprep.mubr.f32.mxu0 0.0
    %383 = vmatmul.mubr.f32.gmra.mrb[0].mxu0 %v295
    %v384 = vpop.f32.mrb[0].mxu0
    %v385 = vadd.f32 %v286, %v384
    %v386 = vpop.f32.mrb[0].mxu0
    %v387 = vadd.f32 %v290, %v386
    %388 = vmatprep.mubr.f32.mxu0 0.0
    %389 = vmatmul.mubr.f32.gmra.mrb[0].mxu0 %v298
    %v390 = vpop.f32.mrb[0].mxu0
    %v391 = vadd.f32 %v286, %v390
    %v392 = vpop.f32.mrb[0].mxu0
    %v393 = vadd.f32 %v290, %v392
    %394 = vmatprep.mubr.f32.mxu0 0.0
    %395 = vmatmul.mubr.f32.gmra.mrb[0].mxu0 %v301
    %v396 = vpop.f32.mrb[0].mxu0
    %v397 = vadd.f32 %v286, %v396
    %v398 = vpop.f32.mrb[0].mxu0
    %v399 = vadd.f32 %v290, %v398
    %400 = vmatprep.mubr.f32.mxu0 0.0
    %401 = vmatmul.mubr.f32.gmra.mrb[0].mxu0 %v304
    %v402 = vpop.f32.mrb[0].mxu0
    %v403 = vadd.f32 %v286, %v402
    %v404 = vpop.f32.mrb[0].mxu0
    %v405 = vadd.f32 %v290, %v404
    %406 = vmatprep.mubr.f32.mxu0 0.0
    %407 = vmatmul.mubr.f32.gmra.mrb[0].mxu0 %v307
    %v408 = vpop.f32.mrb[0].mxu0
    %v409 = vadd.f32 %v286, %v408
    %v410 = vpop.f32.mrb[0].mxu0
    %v411 = vadd.f32 %v290, %v410
    %412 = vmatprep.mubr.f32.mxu0 0.0
    %413 = vmatmul.mubr.f32.gmra.mrb[0].mxu0 %v310
    %v414 = vpop.f32.mrb[0].mxu0
    %v415 = vadd.f32 %v286, %v414
    %v416 = vpop.f32.mrb[0].mxu0
    %v417 = vadd.f32 %v290, %v416
    %418 = vmatprep.mubr.f32.mxu0 0.0
    %419 = vmatmul.mubr.f32.gmra.mrb[0].mxu0 %v313
    %v420 = vpop.f32.mrb[0].mxu0
    %v421 = vadd.f32 %v286, %v420
    %v422 = vpop.f32.mrb[0].mxu0
    %v423 = vadd.f32 %v290, %v422
    %424 = vmatprep.mubr.f32.mxu0 0.0
    %425 = vmatmul.mubr.f32.gmra.mrb[0].mxu0 %v316
    %v426 = vpop.f32.mrb[0].mxu0
    %v427 = vadd.f32 %v286, %v426
    %v428 = vpop.f32.mrb[0].mxu0
    %v429 = vadd.f32 %v290, %v428
    %430 = vdwg.mxu0
    %v431 = vadd.f32 %v385, %v200
    %v432 = vadd.f32 %v387, %v204
    %v433 = vadd.f32 %v391, %v208
    %v434 = vadd.f32 %v393, %v212
    %v435 = vadd.f32 %v397, %v216
    %v436 = vadd.f32 %v399, %v220
    %v437 = vadd.f32 %v403, %v224
    %v438 = vadd.f32 %v405, %v228
    %v439 = vadd.f32 %v409, %v232
    %v440 = vadd.f32 %v411, %v236
    %v441 = vadd.f32 %v415, %v240
    %v442 = vadd.f32 %v417, %v244
    %v443 = vadd.f32 %v421, %v248
    %v444 = vadd.f32 %v423, %v252
    %v445 = vadd.f32 %v427, %v256
    %v446 = vadd.f32 %v429, %v260
    %vm447 = vcmp.ge.f32.partialorder %v431, 0.0
    %vm448 = vcmp.ge.f32.partialorder %v432, 0.0
    %vm449 = vcmp.ge.f32.partialorder %v433, 0.0
    %vm450 = vcmp.ge.f32.partialorder %v434, 0.0
    %vm451 = vcmp.ge.f32.partialorder %v435, 0.0
    %vm452 = vcmp.ge.f32.partialorder %v436, 0.0
    %vm453 = vcmp.ge.f32.partialorder %v437, 0.0
    %vm454 = vcmp.ge.f32.partialorder %v438, 0.0
    %vm455 = vcmp.ge.f32.partialorder %v439, 0.0
    %vm456 = vcmp.ge.f32.partialorder %v440, 0.0
    %vm457 = vcmp.ge.f32.partialorder %v441, 0.0
    %vm458 = vcmp.ge.f32.partialorder %v442, 0.0
    %vm459 = vcmp.ge.f32.partialorder %v443, 0.0
    %vm460 = vcmp.ge.f32.partialorder %v444, 0.0
    %vm461 = vcmp.ge.f32.partialorder %v445, 0.0
    %vm462 = vcmp.ge.f32.partialorder %v446, 0.0
    %v463 = vmul.f32 %v431, 0.2
    %v464 = vmul.f32 %v432, 0.2
    %v465 = vmul.f32 %v433, 0.2
    %v466 = vmul.f32 %v434, 0.2
    %v467 = vmul.f32 %v435, 0.2
    %v468 = vmul.f32 %v436, 0.2
    %v469 = vmul.f32 %v437, 0.2
    %v470 = vmul.f32 %v438, 0.2
    %v471 = vmul.f32 %v439, 0.2
    %v472 = vmul.f32 %v440, 0.2
    %v473 = vmul.f32 %v441, 0.2
    %v474 = vmul.f32 %v442, 0.2
    %v475 = vmul.f32 %v443, 0.2
    %v476 = vmul.f32 %v444, 0.2
    %v477 = vmul.f32 %v445, 0.2
    %v478 = vmul.f32 %v446, 0.2
    %v479 = vsel %vm447, %v431, %v463
    %v480 = vsel %vm448, %v432, %v464
    %v481 = vsel %vm449, %v433, %v465
    %v482 = vsel %vm450, %v434, %v466
    %v483 = vsel %vm451, %v435, %v467
    %v484 = vsel %vm452, %v436, %v468
    %v485 = vsel %vm453, %v437, %v469
    %v486 = vsel %vm454, %v438, %v470
    %v487 = vsel %vm455, %v439, %v471
    %v488 = vsel %vm456, %v440, %v472
    %v489 = vsel %vm457, %v441, %v473
    %v490 = vsel %vm458, %v442, %v474
    %v491 = vsel %vm459, %v443, %v475
    %v492 = vsel %vm460, %v444, %v476
    %v493 = vsel %vm461, %v445, %v477
    %v494 = vsel %vm462, %v446, %v478
    %v495 = vld [vmem:[%s5] sm:$0xff]
    %v496 = vld [vmem:[%s5 + $0x8] sm:$0xff]
    %v497 = vld [vmem:[%s5 + $0x10] sm:$0xff]
    %v498 = vld [vmem:[%s5 + $0x18] sm:$0xff]
    %v499 = vld [vmem:[%s5 + $0x20] sm:$0xff]
    %v500 = vld [vmem:[%s5 + $0x28] sm:$0xff]
    %v501 = vld [vmem:[%s5 + $0x30] sm:$0xff]
    %v502 = vld [vmem:[%s5 + $0x38] sm:$0xff]
    %v503 = vld [vmem:[%s5 + $0x40] sm:$0xff]
    %v504 = vld [vmem:[%s5 + $0x48] sm:$0xff]
    %v505 = vld [vmem:[%s5 + $0x50] sm:$0xff]
    %v506 = vld [vmem:[%s5 + $0x58] sm:$0xff]
    %v507 = vld [vmem:[%s5 + $0x60] sm:$0xff]
    %v508 = vld [vmem:[%s5 + $0x68] sm:$0xff]
    %v509 = vld [vmem:[%s5 + $0x70] sm:$0xff]
    %v510 = vld [vmem:[%s5 + $0x78] sm:$0xff]
    %v511 = vld [vmem:[%s5 + $0x80] sm:$0xff]
    %v512 = vld [vmem:[%s5 + $0x88] sm:$0xff]
    %v513 = vld [vmem:[%s5 + $0x90] sm:$0xff]
    %v514 = vld [vmem:[%s5 + $0x98] sm:$0xff]
    %v515 = vld [vmem:[%s5 + $0xa0] sm:$0xff]
    %v516 = vld [vmem:[%s5 + $0xa8] sm:$0xff]
    %v517 = vld [vmem:[%s5 + $0xb0] sm:$0xff]
    %v518 = vld [vmem:[%s5 + $0xb8] sm:$0xff]
    %v519 = vld [vmem:[%s5 + $0xc0] sm:$0xff]
    %v520 = vld [vmem:[%s5 + $0xc8] sm:$0xff]
    %v521 = vld [vmem:[%s5 + $0xd0] sm:$0xff]
    %v522 = vld [vmem:[%s5 + $0xd8] sm:$0xff]
    %v523 = vld [vmem:[%s5 + $0xe0] sm:$0xff]
    %v524 = vld [vmem:[%s5 + $0xe8] sm:$0xff]
    %v525 = vld [vmem:[%s5 + $0xf0] sm:$0xff]
    %v526 = vld [vmem:[%s5 + $0xf8] sm:$0xff]
    %v527 = vld [vmem:[%s6] sm:$0xff]
    %v528 = vld [vmem:[%s6 + $0x8] sm:$0xff]
    %v529 = vld [vmem:[%s6 + $0x10] sm:$0xff]
    %v530 = vld [vmem:[%s6 + $0x18] sm:$0xff]
    %v531 = vld [vmem:[%s6 + $0x20] sm:$0xff]
    %v532 = vld [vmem:[%s6 + $0x28] sm:$0xff]
    %v533 = vld [vmem:[%s6 + $0x30] sm:$0xff]
    %v534 = vld [vmem:[%s6 + $0x38] sm:$0xff]
    %535 = vmatprep.subr.mxu0 0.0
    %536 = vmatpush1.msra.mxu0 %v495
    %537 = vmatprep.subr.mxu0 0.0
    %538 = vmatpush1.msra.mxu0 %v496
    %539 = vmatprep.subr.mxu0 0.0
    %540 = vmatpush1.msra.mxu0 %v497
    %541 = vmatprep.subr.mxu0 0.0
    %542 = vmatpush1.msra.mxu0 %v498
    %543 = vmatprep.subr.mxu0 0.0
    %544 = vmatpush1.msra.mxu0 %v499
    %545 = vmatprep.subr.mxu0 0.0
    %546 = vmatpush1.msra.mxu0 %v500
    %547 = vmatprep.subr.mxu0 0.0
    %548 = vmatpush1.msra.mxu0 %v501
    %549 = vmatprep.subr.mxu0 0.0
    %550 = vmatpush1.msra.mxu0 %v502
    %551 = vmatprep.subr.mxu0 0.0
    %552 = vmatpush1.msra.mxu0 %v503
    %553 = vmatprep.subr.mxu0 0.0
    %554 = vmatpush1.msra.mxu0 %v504
    %555 = vmatprep.subr.mxu0 0.0
    %556 = vmatpush1.msra.mxu0 %v505
    %557 = vmatprep.subr.mxu0 0.0
    %558 = vmatpush1.msra.mxu0 %v506
    %559 = vmatprep.subr.mxu0 0.0
    %560 = vmatpush1.msra.mxu0 %v507
    %561 = vmatprep.subr.mxu0 0.0
    %562 = vmatpush1.msra.mxu0 %v508
    %563 = vmatprep.subr.mxu0 0.0
    %564 = vmatpush1.msra.mxu0 %v509
    %565 = vmatprep.subr.mxu0 0.0
    %566 = vmatpush1.msra.mxu0 %v510
    %567 = vmatprep.subr.mxu0 0.0
    %568 = vmatpush1.msra.mxu0 %v511
    %569 = vmatprep.subr.mxu0 0.0
    %570 = vmatpush1.msra.mxu0 %v512
    %571 = vmatprep.subr.mxu0 0.0
    %572 = vmatpush1.msra.mxu0 %v513
    %573 = vmatprep.subr.mxu0 0.0
    %574 = vmatpush1.msra.mxu0 %v514
    %575 = vmatprep.subr.mxu0 0.0
    %576 = vmatpush1.msra.mxu0 %v515
    %577 = vmatprep.subr.mxu0 0.0
    %578 = vmatpush1.msra.mxu0 %v516
    %579 = vmatprep.subr.mxu0 0.0
    %580 = vmatpush1.msra.mxu0 %v517
    %581 = vmatprep.subr.mxu0 0.0
    %582 = vmatpush1.msra.mxu0 %v518
    %583 = vmatprep.subr.mxu0 0.0
    %584 = vmatpush1.msra.mxu0 %v519
    %585 = vmatprep.subr.mxu0 0.0
    %586 = vmatpush1.msra.mxu0 %v520
    %587 = vmatprep.subr.mxu0 0.0
    %588 = vmatpush1.msra.mxu0 %v521
    %589 = vmatprep.subr.mxu0 0.0
    %590 = vmatpush1.msra.mxu0 %v522
    %591 = vmatprep.subr.mxu0 0.0
    %592 = vmatpush1.msra.mxu0 %v523
    %593 = vmatprep.subr.mxu0 0.0
    %594 = vmatpush1.msra.mxu0 %v524
    %595 = vmatprep.subr.mxu0 0.0
    %596 = vmatpush1.msra.mxu0 %v525
    %597 = vmatprep.subr.mxu0 0.0
    %598 = vmatpush1.msra.mxu0 %v526
    %599 = vmatprep.mubr.f32.mxu0 %v480
    %600 = vmatmul.mubr.f32.gmra.mrb[0].mxu0 %v479
    %v601 = vpop.f32.mrb[0].mxu0
    %v602 = vadd.f32 %v527, %v601
    %v603 = vpop.f32.mrb[0].mxu0
    %604 = vmatprep.mubr.f32.mxu0 %v482
    %605 = vmatmul.mubr.f32.gmra.mrb[0].mxu0 %v481
    %v606 = vpop.f32.mrb[0].mxu0
    %v607 = vadd.f32 %v528, %v606
    %v608 = vpop.f32.mrb[0].mxu0
    %609 = vmatprep.mubr.f32.mxu0 %v484
    %610 = vmatmul.mubr.f32.gmra.mrb[0].mxu0 %v483
    %v611 = vpop.f32.mrb[0].mxu0
    %v612 = vadd.f32 %v529, %v611
    %v613 = vpop.f32.mrb[0].mxu0
    %614 = vmatprep.mubr.f32.mxu0 %v486
    %615 = vmatmul.mubr.f32.gmra.mrb[0].mxu0 %v485
    %v616 = vpop.f32.mrb[0].mxu0
    %v617 = vadd.f32 %v530, %v616
    %v618 = vpop.f32.mrb[0].mxu0
    %619 = vmatprep.mubr.f32.mxu0 %v488
    %620 = vmatmul.mubr.f32.gmra.mrb[0].mxu0 %v487
    %v621 = vpop.f32.mrb[0].mxu0
    %v622 = vadd.f32 %v531, %v621
    %v623 = vpop.f32.mrb[0].mxu0
    %624 = vmatprep.mubr.f32.mxu0 %v490
    %625 = vmatmul.mubr.f32.gmra.mrb[0].mxu0 %v489
    %v626 = vpop.f32.mrb[0].mxu0
    %v627 = vadd.f32 %v532, %v626
    %v628 = vpop.f32.mrb[0].mxu0
    %629 = vmatprep.mubr.f32.mxu0 %v492
    %630 = vmatmul.mubr.f32.gmra.mrb[0].mxu0 %v491
    %v631 = vpop.f32.mrb[0].mxu0
    %v632 = vadd.f32 %v533, %v631
    %v633 = vpop.f32.mrb[0].mxu0
    %634 = vmatprep.mubr.f32.mxu0 %v494
    %635 = vmatmul.mubr.f32.gmra.mrb[0].mxu0 %v493
    %v636 = vpop.f32.mrb[0].mxu0
    %v637 = vadd.f32 %v534, %v636
    %v638 = vpop.f32.mrb[0].mxu0
    %639 = vdwg.mxu0
    %vm640 = vcmask 64512
    %v641 = vsel %vm640, %v602, -inf
    %642 = vmax.xlane.f32.xlu0 %v641
    %v643 = vpop.xlane.xlu0 %642
    %v644 = vsel %vm640, %v607, -inf
    %645 = vmax.xlane.f32.xlu0 %v644
    %v646 = vpop.xlane.xlu0 %645
    %v647 = vsel %vm640, %v612, -inf
    %648 = vmax.xlane.f32.xlu0 %v647
    %v649 = vpop.xlane.xlu0 %648
    %v650 = vsel %vm640, %v617, -inf
    %651 = vmax.xlane.f32.xlu0 %v650
    %v652 = vpop.xlane.xlu0 %651
    %v653 = vsel %vm640, %v622, -inf
    %654 = vmax.xlane.f32.xlu0 %v653
    %v655 = vpop.xlane.xlu0 %654
    %v656 = vsel %vm640, %v627, -inf
    %657 = vmax.xlane.f32.xlu0 %v656
    %v658 = vpop.xlane.xlu0 %657
    %v659 = vsel %vm640, %v632, -inf
    %660 = vmax.xlane.f32.xlu0 %v659
    %v661 = vpop.xlane.xlu0 %660
    %v662 = vsel %vm640, %v637, -inf
    %663 = vmax.xlane.f32.xlu0 %v662
    %v664 = vpop.xlane.xlu0 %663
    %v665 = vsub.f32 %v602, %v643
    %v666 = vsub.f32 %v607, %v646
    %v667 = vsub.f32 %v612, %v649
    %v668 = vsub.f32 %v617, %v652
    %v669 = vsub.f32 %v622, %v655
    %v670 = vsub.f32 %v627, %v658
    %v671 = vsub.f32 %v632, %v661
    %v672 = vsub.f32 %v637, %v664
    %v673 = vmul.f32 %v665, 1.442695
    %v674 = vpow.pop %v673
    %v675 = vmul.f32 %v666, 1.442695
    %v676 = vpow.pop %v675
    %v677 = vmul.f32 %v667, 1.442695
    %v678 = vpow.pop %v677
    %v679 = vmul.f32 %v668, 1.442695
    %v680 = vpow.pop %v679
    %v681 = vmul.f32 %v669, 1.442695
    %v682 = vpow.pop %v681
    %v683 = vmul.f32 %v670, 1.442695
    %v684 = vpow.pop %v683
    %v685 = vmul.f32 %v671, 1.442695
    %v686 = vpow.pop %v685
    %v687 = vmul.f32 %v672, 1.442695
    %v688 = vpow.pop %v687
    %v689 = vsel %vm640, %v674, 0.0
    %690 = vadd.xlane.f32.xlu0 %v689
    %v691 = vpop.xlane.xlu0 %690
    %v692 = vsel %vm640, %v676, 0.0
    %693 = vadd.xlane.f32.xlu0 %v692
    %v694 = vpop.xlane.xlu0 %693
    %v695 = vsel %vm640, %v678, 0.0
    %696 = vadd.xlane.f32.xlu0 %v695
    %v697 = vpop.xlane.xlu0 %696
    %v698 = vsel %vm640, %v680, 0.0
    %699 = vadd.xlane.f32.xlu0 %v698
    %v700 = vpop.xlane.xlu0 %699
    %v701 = vsel %vm640, %v682, 0.0
    %702 = vadd.xlane.f32.xlu0 %v701
    %v703 = vpop.xlane.xlu0 %702
    %v704 = vsel %vm640, %v684, 0.0
    %705 = vadd.xlane.f32.xlu0 %v704
    %v706 = vpop.xlane.xlu0 %705
    %v707 = vsel %vm640, %v686, 0.0
    %708 = vadd.xlane.f32.xlu0 %v707
    %v709 = vpop.xlane.xlu0 %708
    %v710 = vsel %vm640, %v688, 0.0
    %711 = vadd.xlane.f32.xlu0 %v710
    %v712 = vpop.xlane.xlu0 %711
    %v713 = vrcp.pop %v691
    %v714 = vrcp.pop %v694
    %v715 = vrcp.pop %v697
    %v716 = vrcp.pop %v700
    %v717 = vrcp.pop %v703
    %v718 = vrcp.pop %v706
    %v719 = vrcp.pop %v709
    %v720 = vrcp.pop %v712
    %v721 = vmul.f32 %v691, %v713
    %v722 = vmul.f32 %v694, %v714
    %v723 = vmul.f32 %v697, %v715
    %v724 = vmul.f32 %v700, %v716
    %v725 = vmul.f32 %v703, %v717
    %v726 = vmul.f32 %v706, %v718
    %v727 = vmul.f32 %v709, %v719
    %v728 = vmul.f32 %v712, %v720
    %v729 = vsub.f32 2.0, %v721
    %v730 = vsub.f32 2.0, %v722
    %v731 = vsub.f32 2.0, %v723
    %v732 = vsub.f32 2.0, %v724
    %v733 = vsub.f32 2.0, %v725
    %v734 = vsub.f32 2.0, %v726
    %v735 = vsub.f32 2.0, %v727
    %v736 = vsub.f32 2.0, %v728
    %v737 = vmul.f32 %v713, %v729
    %v738 = vmul.f32 %v714, %v730
    %v739 = vmul.f32 %v715, %v731
    %v740 = vmul.f32 %v716, %v732
    %v741 = vmul.f32 %v717, %v733
    %v742 = vmul.f32 %v718, %v734
    %v743 = vmul.f32 %v719, %v735
    %v744 = vmul.f32 %v720, %v736
    %v745 = vld [vmem:[%s7] sm:$0xff]
    %v747 = vsel %vm640, %v674, 0
    %v750 = vsel %vm640, %v676, 0
    %v753 = vsel %vm640, %v678, 0
    %v756 = vsel %vm640, %v680, 0
    %v759 = vsel %vm640, %v682, 0
    %v762 = vsel %vm640, %v684, 0
    %v765 = vsel %vm640, %v686, 0
    %v768 = vsel %vm640, %v688, 0
    %770 = vmatprep.subr.mxu0 0.0
    %771 = vmatpush1.msra.mxu0 %v745
    %772 = vmatprep.subr.mxu0 0.0
    %773 = vmatpush1.msra.mxu0 0.0
    %774 = vmatprep.subr.mxu0 0.0
    %775 = vmatpush1.msra.mxu0 0.0
    %776 = vmatprep.subr.mxu0 0.0
    %777 = vmatpush1.msra.mxu0 0.0
    %778 = vmatprep.subr.mxu0 0.0
    %779 = vmatpush1.msra.mxu0 0.0
    %780 = vmatprep.subr.mxu0 0.0
    %781 = vmatpush1.msra.mxu0 0.0
    %782 = vmatprep.subr.mxu0 0.0
    %783 = vmatpush1.msra.mxu0 0.0
    %784 = vmatprep.subr.mxu0 0.0
    %785 = vmatpush1.msra.mxu0 0.0
    %786 = vmatprep.subr.mxu0 0.0
    %787 = vmatpush1.msra.mxu0 0.0
    %788 = vmatprep.subr.mxu0 0.0
    %789 = vmatpush1.msra.mxu0 0.0
    %790 = vmatprep.subr.mxu0 0.0
    %791 = vmatpush1.msra.mxu0 0.0
    %792 = vmatprep.subr.mxu0 0.0
    %793 = vmatpush1.msra.mxu0 0.0
    %794 = vmatprep.subr.mxu0 0.0
    %795 = vmatpush1.msra.mxu0 0.0
    %796 = vmatprep.subr.mxu0 0.0
    %797 = vmatpush1.msra.mxu0 0.0
    %798 = vmatprep.subr.mxu0 0.0
    %799 = vmatpush1.msra.mxu0 0.0
    %800 = vmatprep.subr.mxu0 0.0
    %801 = vmatpush1.msra.mxu0 0.0
    %802 = vmatprep.subr.mxu0 0.0
    %803 = vmatpush1.msra.mxu0 0.0
    %804 = vmatprep.subr.mxu0 0.0
    %805 = vmatpush1.msra.mxu0 0.0
    %806 = vmatprep.subr.mxu0 0.0
    %807 = vmatpush1.msra.mxu0 0.0
    %808 = vmatprep.subr.mxu0 0.0
    %809 = vmatpush1.msra.mxu0 0.0
    %810 = vmatprep.subr.mxu0 0.0
    %811 = vmatpush1.msra.mxu0 0.0
    %812 = vmatprep.subr.mxu0 0.0
    %813 = vmatpush1.msra.mxu0 0.0
    %814 = vmatprep.subr.mxu0 0.0
    %815 = vmatpush1.msra.mxu0 0.0
    %816 = vmatprep.subr.mxu0 0.0
    %817 = vmatpush1.msra.mxu0 0.0
    %818 = vmatprep.subr.mxu0 0.0
    %819 = vmatpush1.msra.mxu0 0.0
    %820 = vmatprep.subr.mxu0 0.0
    %821 = vmatpush1.msra.mxu0 0.0
    %822 = vmatprep.subr.mxu0 0.0
    %823 = vmatpush1.msra.mxu0 0.0
    %824 = vmatprep.subr.mxu0 0.0
    %825 = vmatpush1.msra.mxu0 0.0
    %826 = vmatprep.subr.mxu0 0.0
    %827 = vmatpush1.msra.mxu0 0.0
    %828 = vmatprep.subr.mxu0 0.0
    %829 = vmatpush1.msra.mxu0 0.0
    %830 = vmatprep.subr.mxu0 0.0
    %831 = vmatpush1.msra.mxu0 0.0
    %832 = vmatprep.subr.mxu0 0.0
    %833 = vmatpush1.msra.mxu0 0.0
    %834 = vmatprep.mubr.f32.mxu0 0.0
    %835 = vmatmul.mubr.f32.gmra.mrb[0].mxu0 %v747
    %v836 = vpop.f32.mrb[0].mxu0
    %v837 = vadd.f32 0.0, %v836
    %v838 = vpop.f32.mrb[0].mxu0
    %839 = vmatprep.mubr.f32.mxu0 0.0
    %840 = vmatmul.mubr.f32.gmra.mrb[0].mxu0 %v750
    %v841 = vpop.f32.mrb[0].mxu0
    %v842 = vadd.f32 0.0, %v841
    %v843 = vpop.f32.mrb[0].mxu0
    %844 = vmatprep.mubr.f32.mxu0 0.0
    %845 = vmatmul.mubr.f32.gmra.mrb[0].mxu0 %v753
    %v846 = vpop.f32.mrb[0].mxu0
    %v847 = vadd.f32 0.0, %v846
    %v848 = vpop.f32.mrb[0].mxu0
    %849 = vmatprep.mubr.f32.mxu0 0.0
    %850 = vmatmul.mubr.f32.gmra.mrb[0].mxu0 %v756
    %v851 = vpop.f32.mrb[0].mxu0
    %v852 = vadd.f32 0.0, %v851
    %v853 = vpop.f32.mrb[0].mxu0
    %854 = vmatprep.mubr.f32.mxu0 0.0
    %855 = vmatmul.mubr.f32.gmra.mrb[0].mxu0 %v759
    %v856 = vpop.f32.mrb[0].mxu0
    %v857 = vadd.f32 0.0, %v856
    %v858 = vpop.f32.mrb[0].mxu0
    %859 = vmatprep.mubr.f32.mxu0 0.0
    %860 = vmatmul.mubr.f32.gmra.mrb[0].mxu0 %v762
    %v861 = vpop.f32.mrb[0].mxu0
    %v862 = vadd.f32 0.0, %v861
    %v863 = vpop.f32.mrb[0].mxu0
    %864 = vmatprep.mubr.f32.mxu0 0.0
    %865 = vmatmul.mubr.f32.gmra.mrb[0].mxu0 %v765
    %v866 = vpop.f32.mrb[0].mxu0
    %v867 = vadd.f32 0.0, %v866
    %v868 = vpop.f32.mrb[0].mxu0
    %869 = vmatprep.mubr.f32.mxu0 0.0
    %870 = vmatmul.mubr.f32.gmra.mrb[0].mxu0 %v768
    %v871 = vpop.f32.mrb[0].mxu0
    %v872 = vadd.f32 0.0, %v871
    %v873 = vpop.f32.mrb[0].mxu0
    %874 = vdwg.mxu0
    %v875 = vld [vmem:[%s8] sm:$0xff]
    %v876 = vld [vmem:[%s8 + $0x8] sm:$0xff]
    %v877 = vld [vmem:[%s8 + $0x10] sm:$0xff]
    %v878 = vld [vmem:[%s8 + $0x18] sm:$0xff]
    %v879 = vld [vmem:[%s8 + $0x20] sm:$0xff]
    %v880 = vld [vmem:[%s8 + $0x28] sm:$0xff]
    %v881 = vld [vmem:[%s8 + $0x30] sm:$0xff]
    %v882 = vld [vmem:[%s8 + $0x38] sm:$0xff]
    %v883 = vmul.f32 %v837, %v875
    %v884 = vmul.f32 %v842, %v876
    %v885 = vmul.f32 %v847, %v877
    %v886 = vmul.f32 %v852, %v878
    %v887 = vmul.f32 %v857, %v879
    %v888 = vmul.f32 %v862, %v880
    %v889 = vmul.f32 %v867, %v881
    %v890 = vmul.f32 %v872, %v882
    %vm891 = vcmask 523264
    %v893 = vsel %vm891, %v883, 0
    %v896 = vsel %vm891, %v884, 0
    %v899 = vsel %vm891, %v885, 0
    %v902 = vsel %vm891, %v886, 0
    %v905 = vsel %vm891, %v887, 0
    %v908 = vsel %vm891, %v888, 0
    %v911 = vsel %vm891, %v889, 0
    %v914 = vsel %vm891, %v890, 0
    %916 = vmatprep.subr.mxu0 0.0
    %917 = vmatpush1.msra.mxu0 %v34
    %918 = vmatprep.subr.mxu0 0.0
    %919 = vmatpush1.msra.mxu0 %v35
    %920 = vmatprep.subr.mxu0 0.0
    %921 = vmatpush1.msra.mxu0 %v36
    %922 = vmatprep.subr.mxu0 0.0
    %923 = vmatpush1.msra.mxu0 %v37
    %924 = vmatprep.subr.mxu0 0.0
    %925 = vmatpush1.msra.mxu0 %v38
    %926 = vmatprep.subr.mxu0 0.0
    %927 = vmatpush1.msra.mxu0 %v39
    %928 = vmatprep.subr.mxu0 0.0
    %929 = vmatpush1.msra.mxu0 %v40
    %930 = vmatprep.subr.mxu0 0.0
    %931 = vmatpush1.msra.mxu0 %v41
    %932 = vmatprep.subr.mxu0 0.0
    %933 = vmatpush1.msra.mxu0 0.0
    %934 = vmatprep.subr.mxu0 0.0
    %935 = vmatpush1.msra.mxu0 0.0
    %936 = vmatprep.subr.mxu0 0.0
    %937 = vmatpush1.msra.mxu0 0.0
    %938 = vmatprep.subr.mxu0 0.0
    %939 = vmatpush1.msra.mxu0 0.0
    %940 = vmatprep.subr.mxu0 0.0
    %941 = vmatpush1.msra.mxu0 0.0
    %942 = vmatprep.subr.mxu0 0.0
    %943 = vmatpush1.msra.mxu0 0.0
    %944 = vmatprep.subr.mxu0 0.0
    %945 = vmatpush1.msra.mxu0 0.0
    %946 = vmatprep.subr.mxu0 0.0
    %947 = vmatpush1.msra.mxu0 0.0
    %948 = vmatprep.subr.mxu0 0.0
    %949 = vmatpush1.msra.mxu0 0.0
    %950 = vmatprep.subr.mxu0 0.0
    %951 = vmatpush1.msra.mxu0 0.0
    %952 = vmatprep.subr.mxu0 0.0
    %953 = vmatpush1.msra.mxu0 0.0
    %954 = vmatprep.subr.mxu0 0.0
    %955 = vmatpush1.msra.mxu0 0.0
    %956 = vmatprep.subr.mxu0 0.0
    %957 = vmatpush1.msra.mxu0 0.0
    %958 = vmatprep.subr.mxu0 0.0
    %959 = vmatpush1.msra.mxu0 0.0
    %960 = vmatprep.subr.mxu0 0.0
    %961 = vmatpush1.msra.mxu0 0.0
    %962 = vmatprep.subr.mxu0 0.0
    %963 = vmatpush1.msra.mxu0 0.0
    %964 = vmatprep.subr.mxu0 0.0
    %965 = vmatpush1.msra.mxu0 0.0
    %966 = vmatprep.subr.mxu0 0.0
    %967 = vmatpush1.msra.mxu0 0.0
    %968 = vmatprep.subr.mxu0 0.0
    %969 = vmatpush1.msra.mxu0 0.0
    %970 = vmatprep.subr.mxu0 0.0
    %971 = vmatpush1.msra.mxu0 0.0
    %972 = vmatprep.subr.mxu0 0.0
    %973 = vmatpush1.msra.mxu0 0.0
    %974 = vmatprep.subr.mxu0 0.0
    %975 = vmatpush1.msra.mxu0 0.0
    %976 = vmatprep.subr.mxu0 0.0
    %977 = vmatpush1.msra.mxu0 0.0
    %978 = vmatprep.subr.mxu0 0.0
    %979 = vmatpush1.msra.mxu0 0.0
    %980 = vmatprep.mubr.f32.mxu0 0.0
    %981 = vmatmul.mubr.f32.gmra.mrb[0].mxu0 %v893
    %v982 = vpop.f32.mrb[0].mxu0
    %v983 = vadd.f32 0.0, %v982
    %v984 = vpop.f32.mrb[0].mxu0
    %985 = vmatprep.mubr.f32.mxu0 0.0
    %986 = vmatmul.mubr.f32.gmra.mrb[0].mxu0 %v896
    %v987 = vpop.f32.mrb[0].mxu0
    %v988 = vadd.f32 0.0, %v987
    %v989 = vpop.f32.mrb[0].mxu0
    %990 = vmatprep.mubr.f32.mxu0 0.0
    %991 = vmatmul.mubr.f32.gmra.mrb[0].mxu0 %v899
    %v992 = vpop.f32.mrb[0].mxu0
    %v993 = vadd.f32 0.0, %v992
    %v994 = vpop.f32.mrb[0].mxu0
    %995 = vmatprep.mubr.f32.mxu0 0.0
    %996 = vmatmul.mubr.f32.gmra.mrb[0].mxu0 %v902
    %v997 = vpop.f32.mrb[0].mxu0
    %v998 = vadd.f32 0.0, %v997
    %v999 = vpop.f32.mrb[0].mxu0
    %1000 = vmatprep.mubr.f32.mxu0 0.0
    %1001 = vmatmul.mubr.f32.gmra.mrb[0].mxu0 %v905
    %v1002 = vpop.f32.mrb[0].mxu0
    %v1003 = vadd.f32 0.0, %v1002
    %v1004 = vpop.f32.mrb[0].mxu0
    %1005 = vmatprep.mubr.f32.mxu0 0.0
    %1006 = vmatmul.mubr.f32.gmra.mrb[0].mxu0 %v908
    %v1007 = vpop.f32.mrb[0].mxu0
    %v1008 = vadd.f32 0.0, %v1007
    %v1009 = vpop.f32.mrb[0].mxu0
    %1010 = vmatprep.mubr.f32.mxu0 0.0
    %1011 = vmatmul.mubr.f32.gmra.mrb[0].mxu0 %v911
    %v1012 = vpop.f32.mrb[0].mxu0
    %v1013 = vadd.f32 0.0, %v1012
    %v1014 = vpop.f32.mrb[0].mxu0
    %1015 = vmatprep.mubr.f32.mxu0 0.0
    %1016 = vmatmul.mubr.f32.gmra.mrb[0].mxu0 %v914
    %v1017 = vpop.f32.mrb[0].mxu0
    %v1018 = vadd.f32 0.0, %v1017
    %v1019 = vpop.f32.mrb[0].mxu0
    %1020 = vdwg.mxu0
    %v1021 = vmul.f32 %v983, %v737
    %v1022 = vmul.f32 %v988, %v738
    %v1023 = vmul.f32 %v993, %v739
    %v1024 = vmul.f32 %v998, %v740
    %v1025 = vmul.f32 %v1003, %v741
    %v1026 = vmul.f32 %v1008, %v742
    %v1027 = vmul.f32 %v1013, %v743
    %v1028 = vmul.f32 %v1018, %v744
    %v1029 = vxor.u32 %v1021, 2147483648
    %v1030 = vxor.u32 %v1022, 2147483648
    %v1031 = vxor.u32 %v1023, 2147483648
    %v1032 = vxor.u32 %v1024, 2147483648
    %v1033 = vxor.u32 %v1025, 2147483648
    %v1034 = vxor.u32 %v1026, 2147483648
    %v1035 = vxor.u32 %v1027, 2147483648
    %v1036 = vxor.u32 %v1028, 2147483648
    %v1037 = vmul.f32 %v1029, 1.442695
    %v1038 = vpow.pop %v1037
    %v1039 = vmul.f32 %v1030, 1.442695
    %v1040 = vpow.pop %v1039
    %v1041 = vmul.f32 %v1031, 1.442695
    %v1042 = vpow.pop %v1041
    %v1043 = vmul.f32 %v1032, 1.442695
    %v1044 = vpow.pop %v1043
    %v1045 = vmul.f32 %v1033, 1.442695
    %v1046 = vpow.pop %v1045
    %v1047 = vmul.f32 %v1034, 1.442695
    %v1048 = vpow.pop %v1047
    %v1049 = vmul.f32 %v1035, 1.442695
    %v1050 = vpow.pop %v1049
    %v1051 = vmul.f32 %v1036, 1.442695
    %v1052 = vpow.pop %v1051
    %v1053 = vadd.f32 %v1038, 1.0
    %v1054 = vadd.f32 %v1040, 1.0
    %v1055 = vadd.f32 %v1042, 1.0
    %v1056 = vadd.f32 %v1044, 1.0
    %v1057 = vadd.f32 %v1046, 1.0
    %v1058 = vadd.f32 %v1048, 1.0
    %v1059 = vadd.f32 %v1050, 1.0
    %v1060 = vadd.f32 %v1052, 1.0
    %v1061 = vrcp.pop %v1053
    %v1062 = vmul.f32 1.0, %v1061
    %v1063 = vrcp.pop %v1054
    %v1064 = vmul.f32 1.0, %v1063
    %v1065 = vrcp.pop %v1055
    %v1066 = vmul.f32 1.0, %v1065
    %v1067 = vrcp.pop %v1056
    %v1068 = vmul.f32 1.0, %v1067
    %v1069 = vrcp.pop %v1057
    %v1070 = vmul.f32 1.0, %v1069
    %v1071 = vrcp.pop %v1058
    %v1072 = vmul.f32 1.0, %v1071
    %v1073 = vrcp.pop %v1059
    %v1074 = vmul.f32 1.0, %v1073
    %v1075 = vrcp.pop %v1060
    %v1076 = vmul.f32 1.0, %v1075
    %1077 = vst.msk [vmem:[#allocation2] sm:$0xff] %vm293, %v1062
    %1078 = vst.msk [vmem:[#allocation2 + $0x8] sm:$0xff] %vm293, %v1064
    %1079 = vst.msk [vmem:[#allocation2 + $0x10] sm:$0xff] %vm293, %v1066
    %1080 = vst.msk [vmem:[#allocation2 + $0x18] sm:$0xff] %vm293, %v1068
    %1081 = vst.msk [vmem:[#allocation2 + $0x20] sm:$0xff] %vm293, %v1070
    %1082 = vst.msk [vmem:[#allocation2 + $0x28] sm:$0xff] %vm293, %v1072
    %1083 = vst.msk [vmem:[#allocation2 + $0x30] sm:$0xff] %vm293, %v1074
    %1084 = vst.msk [vmem:[#allocation2 + $0x38] sm:$0xff] %vm293, %v1076
    // Predicated region
    $region38: #{tpu_custom_call.1} parent=1 // pred_check
      _
    $region39: #{tpu_custom_call.1} parent=1 // pred_check_branch
      %1086 = sbr.rel (0) target = $region41
    $region40: #{tpu_custom_call.1} parent=1 // pred_region
      %s1088 = ssub.s32 1024, 1024
      %1089 = vsyncadd [#allocation3], %s1088
      %s1090 = sshll.u32 [#allocation2], 4
      %s1091 = int_to_ptr.vmem [resolvable:$true] %s1090
      %1096 = dma.vmem_to_hbm [thread:$0]  %s1091, 1024, %s9, [#allocation3], 128, 128, 8
    $region41: #{tpu_custom_call.1} parent=1 // pred_fallthru
      _
    // Predicated region
    $region42: #{tpu_custom_call.1} parent=1 // pred_check
      _
    $region43: #{tpu_custom_call.1} parent=1 // pred_check_branch
      %1098 = sbr.rel (0) target = $region45
    $region44: #{tpu_custom_call.1} parent=1 // pred_region
      %1099 = dma.done [#allocation3], 1024
    $region45: #{tpu_custom_call.1} parent=1 // pred_fallthru
      _
    %1100 = vsyncpa [#allocation3], 1

</llo_original>
